<compile_context>
chip_gen: v7x
topology: tpu7x:2x2x1
jax: 0.10.0
libtpu: 0.0.40
codegen_flags: <defaults>
</compile_context>

<pallas_src>
import jax
import jax.numpy as jnp
from jax.experimental import pallas as pl
from jax.experimental.pallas import tpu as pltpu


# TODO(synk): only the 'sum' aggregator + tanh path of the module is
# implemented; 'concat' / 'neighbor' variants are straightforward wrapper
# changes but are not exercised here.


def _neighbor_agg_kernel(self_ref, nbr_ref, rel_ref, user_ref, w_ref, b_ref,
                         out_ref):
    # Per-grid-step views (TR rows = TR (batch, entity) pairs):
    #   self_ref : (TR, D)        nbr_ref / rel_ref : (TR, N, D)
    #   user_ref : (TR, D)        w_ref : (D, D)    b_ref : (1, D)
    rel = rel_ref[...]                                   # (TR, N, D)
    nbr = nbr_ref[...]                                   # (TR, N, D)
    user = user_ref[...]                                 # (TR, D)

    # user-relation scores: contraction over D -> (TR, N)
    scores = jnp.sum(rel * user[:, None, :], axis=-1)

    # softmax over the neighbor axis
    m = jnp.max(scores, axis=-1, keepdims=True)
    e = jnp.exp(scores - m)
    denom = jnp.sum(e, axis=-1, keepdims=True)
    p = e * pl.reciprocal(denom, approx=False)           # (TR, N)

    # weighted neighbor aggregation: (TR, D)
    agg = jnp.sum(p[:, :, None] * nbr, axis=1)

    # 'sum' aggregator: self + aggregated neighbors, then Linear(dim, dim)
    # on the MXU over the whole row tile, bias, tanh.
    hidden = self_ref[...] + agg                         # (TR, D)
    y = jnp.dot(hidden, w_ref[...], preferred_element_type=jnp.float32)
    y = y + b_ref[...]
    out_ref[...] = jnp.tanh(y).astype(out_ref.dtype)


def _pick_row_tile(n_rows, n_neighbors, dim, itemsize,
                   vmem_budget_bytes=8 * 1024 * 1024):
    """Largest row tile whose double-buffered streams fit a VMEM budget."""
    # nbr + rel streams (double-buffered) dominate; self/user/out are small.
    bytes_per_row = (2 * 2 * n_neighbors * dim + 2 * 3 * dim) * itemsize
    tr = vmem_budget_bytes // max(bytes_per_row, 1)
    return int(max(8, min(tr, 2048, n_rows)))


def neighbor_aggregator_sum(self_vectors, neighbor_vectors, neighbor_relations,
                            user_embeddings, W, b, *, row_tile=None):
    """Pallas forward pass, 'sum' aggregator, tanh activation."""
    B, E, N, D = neighbor_vectors.shape
    R = B * E
    dtype = self_vectors.dtype

    # Flatten (B, E) -> rows and broadcast the user embedding per row.  The
    # extra B*E*D read is ~1/(2N) of the dominant (B,E,N,D) streams and buys a
    # simple, large, row-tiled grid.
    self2 = self_vectors.reshape(R, D)
    nbr2 = neighbor_vectors.reshape(R, N, D)
    rel2 = neighbor_relations.reshape(R, N, D)
    user2 = jnp.broadcast_to(user_embeddings[:, None, :], (B, E, D)).reshape(R, D)
    b2 = b.reshape(1, D)

    if row_tile is None:
        row_tile = _pick_row_tile(R, N, D, jnp.dtype(dtype).itemsize)
    TR = int(row_tile)

    if TR >= R:
        TR = R                      # single block covering the full row axis
        R_pad = R
    else:
        TR = max(8, (TR // 8) * 8)  # keep the sublane axis a multiple of 8
        R_pad = pl.cdiv(R, TR) * TR

    if R_pad != R:
        pad = R_pad - R             # zero rows -> finite garbage, sliced off
        self2 = jnp.pad(self2, ((0, pad), (0, 0)))
        nbr2 = jnp.pad(nbr2, ((0, pad), (0, 0), (0, 0)))
        rel2 = jnp.pad(rel2, ((0, pad), (0, 0), (0, 0)))
        user2 = jnp.pad(user2, ((0, pad), (0, 0)))

    grid = (R_pad // TR,)

    out = pl.pallas_call(
        _neighbor_agg_kernel,
        out_shape=jax.ShapeDtypeStruct((R_pad, D), dtype),
        grid_spec=pltpu.PrefetchScalarGridSpec(
            num_scalar_prefetch=0,
            grid=grid,
            in_specs=[
                pl.BlockSpec((TR, D), lambda i: (i, 0)),        # self
                pl.BlockSpec((TR, N, D), lambda i: (i, 0, 0)),  # neighbors
                pl.BlockSpec((TR, N, D), lambda i: (i, 0, 0)),  # relations
                pl.BlockSpec((TR, D), lambda i: (i, 0)),        # user per row
                pl.BlockSpec((D, D), lambda i: (0, 0)),         # W (resident)
                pl.BlockSpec((1, D), lambda i: (0, 0)),         # b (resident)
            ],
            out_specs=pl.BlockSpec((TR, D), lambda i: (i, 0)),
        ),
        compiler_params=pltpu.CompilerParams(
            dimension_semantics=("parallel",),       # no cross-step carry
            vmem_limit_bytes=32 * 1024 * 1024,       # safe on v5e/v6e/v7x
        ),
    )(self2, nbr2, rel2, user2, W, b2)

    return out[:R].reshape(B, E, D)


def reference_jax(self_vectors, neighbor_vectors, neighbor_relations,
                  user_embeddings, W, b):
    """Pure-JAX reference mirroring the PyTorch forward ('sum', tanh)."""
    B, E, N, D = neighbor_vectors.shape
    u = user_embeddings.reshape(B, 1, 1, D)
    scores = jnp.sum(u * neighbor_relations, axis=-1)            # (B, E, N)
    p = jax.nn.softmax(scores, axis=-1)[..., None]               # (B, E, N, 1)
    agg = jnp.sum(p * neighbor_vectors, axis=2)                  # (B, E, D)
    out = (self_vectors + agg).reshape(-1, D)
    out = out @ W + b                                            # Linear(dim, dim)
    return jnp.tanh(out.reshape(B, E, D))


if __name__ == "__main__":
    B, E, N, D = 2, 8, 4, 32  # batch, entities, neighbors per entity, dim

    key = jax.random.PRNGKey(0)
    k_sv, k_nbr, k_rel, k_usr, k_w, k_b = jax.random.split(key, 6)

    self_vectors = jax.random.normal(k_sv, (B, E, D), dtype=jnp.float32)
    neighbor_vectors = jax.random.normal(k_nbr, (B, E, N, D), dtype=jnp.float32)
    neighbor_relations = jax.random.normal(k_rel, (B, E, N, D), dtype=jnp.float32)
    user_embeddings = jax.random.normal(k_usr, (B, D), dtype=jnp.float32)

    # Deterministic parameter init (Linear(dim, dim, bias=True)).
    # W is stored as (in_dim, out_dim) so the kernel computes x @ W + b.
    W = 0.1 * jax.random.normal(k_w, (D, D), dtype=jnp.float32)
    b = 0.1 * jax.random.normal(k_b, (D,), dtype=jnp.float32)

    out = neighbor_aggregator_sum(self_vectors, neighbor_vectors,
                                  neighbor_relations, user_embeddings, W, b)
    out = jax.block_until_ready(out)

    ref = reference_jax(self_vectors, neighbor_vectors, neighbor_relations,
                        user_embeddings, W, b)

    assert out.shape == (B, E, D)
    assert jnp.allclose(out, ref, atol=1e-5, rtol=1e-5), "mismatch vs reference"

    print("KERNEL_OK")
</pallas_src>

<mosaic_0001>
module attributes {stable_mosaic.version = 11 : i64} {
  func.func @_neighbor_agg_kernel(%arg0: i32, %arg1: memref<16x32xf32, #tpu.memory_space<vmem>>, %arg2: memref<16x4x32xf32, #tpu.memory_space<vmem>>, %arg3: memref<16x4x32xf32, #tpu.memory_space<vmem>>, %arg4: memref<16x32xf32, #tpu.memory_space<vmem>>, %arg5: memref<32x32xf32, #tpu.memory_space<vmem>>, %arg6: memref<1x32xf32, #tpu.memory_space<vmem>>, %arg7: memref<16x32xf32, #tpu.memory_space<vmem>>) attributes {dimension_semantics = [#tpu.dimension_semantics<parallel>], iteration_bounds = array<i64: 1>, scalar_prefetch = 0 : i64, scratch_operands = 0 : i64, tpu.core_type = #tpu.core_type<tc>, window_params = [{transform_indices = @transform_0, window_bounds = array<i64: 16, 32>}, {transform_indices = @transform_1, window_bounds = array<i64: 16, 4, 32>}, {transform_indices = @transform_2, window_bounds = array<i64: 16, 4, 32>}, {transform_indices = @transform_3, window_bounds = array<i64: 16, 32>}, {pipeline_mode = #tpu.pipeline_mode<synchronous>, transform_indices = @transform_4, window_bounds = array<i64: 32, 32>}, {pipeline_mode = #tpu.pipeline_mode<synchronous>, transform_indices = @transform_5, window_bounds = array<i64: 1, 32>}, {transform_indices = @transform_6, window_bounds = array<i64: 16, 32>}]} {
    %c0 = arith.constant 0 : index
    %c0_0 = arith.constant 0 : index
    %c0_1 = arith.constant 0 : index
    %0 = vector.load %arg3[%c0, %c0_0, %c0_1] : memref<16x4x32xf32, #tpu.memory_space<vmem>>, vector<16x4x32xf32>
    %c0_2 = arith.constant 0 : index
    %c0_3 = arith.constant 0 : index
    %c0_4 = arith.constant 0 : index
    %1 = vector.load %arg2[%c0_2, %c0_3, %c0_4] : memref<16x4x32xf32, #tpu.memory_space<vmem>>, vector<16x4x32xf32>
    %c0_5 = arith.constant 0 : index
    %c0_6 = arith.constant 0 : index
    %2 = vector.load %arg4[%c0_5, %c0_6] : memref<16x32xf32, #tpu.memory_space<vmem>>, vector<16x32xf32>
    %3 = vector.shape_cast %2 : vector<16x32xf32> to vector<16x1x32xf32>
    %4 = vector.broadcast %3 : vector<16x1x32xf32> to vector<16x4x32xf32>
    %5 = arith.mulf %0, %4 : vector<16x4x32xf32>
    %cst = arith.constant dense<0.000000e+00> : vector<16x4xf32>
    %6 = vector.multi_reduction <add>, %5, %cst [2] : vector<16x4x32xf32> to vector<16x4xf32>
    %cst_7 = arith.constant dense<0xFF800000> : vector<16xf32>
    %7 = vector.multi_reduction <maximumf>, %6, %cst_7 [1] : vector<16x4xf32> to vector<16xf32>
    %8 = vector.shape_cast %7 : vector<16xf32> to vector<16x1xf32>
    %9 = vector.broadcast %8 : vector<16x1xf32> to vector<16x4xf32>
    %10 = arith.subf %6, %9 : vector<16x4xf32>
    %11 = math.exp %10 : vector<16x4xf32>
    %cst_8 = arith.constant dense<0.000000e+00> : vector<16xf32>
    %12 = vector.multi_reduction <add>, %11, %cst_8 [1] : vector<16x4xf32> to vector<16xf32>
    %13 = vector.shape_cast %12 : vector<16xf32> to vector<16x1xf32>
    %14 = tpu.reciprocal %13 : vector<16x1xf32> -> vector<16x1xf32>
    %15 = vector.broadcast %14 : vector<16x1xf32> to vector<16x4xf32>
    %16 = arith.mulf %11, %15 : vector<16x4xf32>
    %17 = vector.shape_cast %16 : vector<16x4xf32> to vector<16x4x1xf32>
    %18 = vector.broadcast %17 : vector<16x4x1xf32> to vector<16x4x32xf32>
    %19 = arith.mulf %18, %1 : vector<16x4x32xf32>
    %cst_9 = arith.constant dense<0.000000e+00> : vector<16x32xf32>
    %20 = vector.multi_reduction <add>, %19, %cst_9 [1] : vector<16x4x32xf32> to vector<16x32xf32>
    %c0_10 = arith.constant 0 : index
    %c0_11 = arith.constant 0 : index
    %21 = vector.load %arg1[%c0_10, %c0_11] : memref<16x32xf32, #tpu.memory_space<vmem>>, vector<16x32xf32>
    %22 = arith.addf %21, %20 : vector<16x32xf32>
    %c0_12 = arith.constant 0 : index
    %c0_13 = arith.constant 0 : index
    %23 = vector.load %arg5[%c0_12, %c0_13] : memref<32x32xf32, #tpu.memory_space<vmem>>, vector<32x32xf32>
    %cst_14 = arith.constant dense<0.000000e+00> : vector<16x32xf32>
    %24 = tpu.matmul %22, %23, %cst_14 {dimension_numbers = #tpu.dot_dimension_numbers<[1], [0], [0], [1], [0, 0, 1, 1], [], []>} : vector<16x32xf32>, vector<32x32xf32>, vector<16x32xf32> -> vector<16x32xf32>
    %c0_15 = arith.constant 0 : index
    %c0_16 = arith.constant 0 : index
    %25 = vector.load %arg6[%c0_15, %c0_16] : memref<1x32xf32, #tpu.memory_space<vmem>>, vector<1x32xf32>
    %26 = vector.broadcast %25 : vector<1x32xf32> to vector<16x32xf32>
    %27 = arith.addf %24, %26 : vector<16x32xf32>
    %28 = math.tanh %27 : vector<16x32xf32>
    %c0_17 = arith.constant 0 : index
    %c0_18 = arith.constant 0 : index
    %29 = vector.load %arg7[%c0_17, %c0_18] : memref<16x32xf32, #tpu.memory_space<vmem>>, vector<16x32xf32>
    tpu.vector_store %arg7[%c0_17, %c0_18], %28 {strides = array<i32>} : memref<16x32xf32, #tpu.memory_space<vmem>>, vector<16x32xf32>,
    return
  }
  func.func @transform_0(%arg0: i32) -> (i32, i32) {
    %c0_i32 = arith.constant 0 : i32
    %c0_i32_0 = arith.constant 0 : i32
    return %arg0, %c0_i32 : i32, i32
  }
  func.func @transform_1(%arg0: i32) -> (i32, i32, i32) {
    %c0_i32 = arith.constant 0 : i32
    %c0_i32_0 = arith.constant 0 : i32
    %c0_i32_1 = arith.constant 0 : i32
    return %arg0, %c0_i32, %c0_i32_0 : i32, i32, i32
  }
  func.func @transform_2(%arg0: i32) -> (i32, i32, i32) {
    %c0_i32 = arith.constant 0 : i32
    %c0_i32_0 = arith.constant 0 : i32
    %c0_i32_1 = arith.constant 0 : i32
    return %arg0, %c0_i32, %c0_i32_0 : i32, i32, i32
  }
  func.func @transform_3(%arg0: i32) -> (i32, i32) {
    %c0_i32 = arith.constant 0 : i32
    %c0_i32_0 = arith.constant 0 : i32
    return %arg0, %c0_i32 : i32, i32
  }
  func.func @transform_4(%arg0: i32) -> (i32, i32) {
    %c0_i32 = arith.constant 0 : i32
    %c0_i32_0 = arith.constant 0 : i32
    %c0_i32_1 = arith.constant 0 : i32
    return %c0_i32, %c0_i32_0 : i32, i32
  }
  func.func @transform_5(%arg0: i32) -> (i32, i32) {
    %c0_i32 = arith.constant 0 : i32
    %c0_i32_0 = arith.constant 0 : i32
    %c0_i32_1 = arith.constant 0 : i32
    return %c0_i32, %c0_i32_0 : i32, i32
  }
  func.func @transform_6(%arg0: i32) -> (i32, i32) {
    %c0_i32 = arith.constant 0 : i32
    %c0_i32_0 = arith.constant 0 : i32
    return %arg0, %c0_i32 : i32, i32
  }
}

</mosaic_0001>

<llo_original>
// kernel: tpu_custom_call.1
$region0: #{tpu_custom_call.1}
  #allocation0 [shape = 'u32[]', space=smem, size = 0x4, offset = 0x4, fixed_abs, tag = 'smem constant byte address 0x4 - core index']
  #allocation1 [shape = 'u32[144,128]{1,0:T(1,128)}', space=vmem, size = 0x12000, scoped, tag = 'internal scratch']
  %s0 = inlined_call_operand.hbm [shape: f32[16,32], index: 0, kind: input, shape index: {}]
  %s1 = inlined_call_operand.hbm [shape: f32[16,4,32], index: 1, kind: input, shape index: {}]
  %s2 = inlined_call_operand.hbm [shape: f32[16,4,32], index: 2, kind: input, shape index: {}]
  %s3 = inlined_call_operand.hbm [shape: f32[16,32], index: 3, kind: input, shape index: {}]
  %s4 = inlined_call_operand.hbm [shape: f32[32,32], index: 4, kind: input, shape index: {}]
  %s5 = inlined_call_operand.vmem [shape: f32[1,32], index: 5, kind: input, shape index: {}]
  %s6 = inlined_call_operand.hbm [shape: f32[16,32], index: 6, kind: output, shape index: {}]
  %s7 = sld [smem:[#allocation0]]
  $region54: #{tpu_custom_call.1} parent=0
    _
  %s9 = ssub.s32 1, %s7
  %s10 = scalar_select 0, %s9, %s7
  $region1: #{tpu_custom_call.1} parent=0
    #allocation2 [shape = 'u8[8192]{0}', space=vmem, size = 0x2000, scoped, tag = 'input window, operand 0, single buffered']
    #allocation3 [shape = 's32[1]{0}', space=sflag, size = 0x4, scoped, tag = 'scoped memory for tpu_custom_call.1']
    #allocation4 [shape = 's32[1]{0}', space=sflag, size = 0x4, scoped, tag = 'scoped memory for tpu_custom_call.1']
    #allocation5 [shape = 'u8[32768]{0}', space=vmem, size = 0x8000, scoped, tag = 'input window, operand 1, single buffered']
    #allocation6 [shape = 's32[1]{0}', space=sflag, size = 0x4, scoped, tag = 'scoped memory for tpu_custom_call.1']
    #allocation7 [shape = 'u8[32768]{0}', space=vmem, size = 0x8000, scoped, tag = 'input window, operand 2, single buffered']
    #allocation8 [shape = 'u8[8192]{0}', space=vmem, size = 0x2000, scoped, tag = 'input window, operand 3, single buffered']
    #allocation9 [shape = 's32[1]{0}', space=sflag, size = 0x4, scoped, tag = 'scoped memory for tpu_custom_call.1']
    #allocation10 [shape = 'u8[16384]{0}', space=vmem, size = 0x4000, scoped, tag = 'input window, operand 4, single buffered']
    #allocation11 [shape = 'u8[8192]{0}', space=vmem, size = 0x2000, scoped, tag = 'output window, operand 0, single buffered']
    %11 = vsyncpa [#allocation3], 0
    %12 = vsyncpa [#allocation6], 0
    %13 = vsyncpa [#allocation9], 0
    %14 = vsyncpa [#allocation4], 0
    // Predicated region
    $region2: #{tpu_custom_call.1} parent=1 // pred_check
      _
    $region3: #{tpu_custom_call.1} parent=1 // pred_check_branch
      %16 = sbr.rel (0) target = $region5
    $region4: #{tpu_custom_call.1} parent=1 // pred_region
      %s18 = ssub.s32 256, 256
      %19 = vsyncadd [#allocation3], %s18
      %s20 = sshll.u32 [#allocation2], 4
      %s21 = int_to_ptr.vmem [resolvable:$true] %s20
      %26 = dma.hbm_to_vmem [thread:$0]  %s0, 256, %s21, [#allocation3], 128, 128, 8
    $region5: #{tpu_custom_call.1} parent=1 // pred_fallthru
      _
    // Predicated region
    $region6: #{tpu_custom_call.1} parent=1 // pred_check
      _
    $region7: #{tpu_custom_call.1} parent=1 // pred_check_branch
      %28 = sbr.rel (0) target = $region9
    $region8: #{tpu_custom_call.1} parent=1 // pred_region
      %s30 = ssub.s32 1024, 1024
      %31 = vsyncadd [#allocation6], %s30
      %s32 = sshll.u32 [#allocation5], 4
      %s33 = int_to_ptr.vmem [resolvable:$true] %s32
      %38 = dma.hbm_to_vmem [thread:$0]  %s1, 1024, %s33, [#allocation6], 64, 64, 4
    $region9: #{tpu_custom_call.1} parent=1 // pred_fallthru
      _
    // Predicated region
    $region10: #{tpu_custom_call.1} parent=1 // pred_check
      _
    $region11: #{tpu_custom_call.1} parent=1 // pred_check_branch
      %40 = sbr.rel (0) target = $region13
    $region12: #{tpu_custom_call.1} parent=1 // pred_region
      %s42 = ssub.s32 1024, 1024
      %43 = vsyncadd [#allocation6], %s42
      %s44 = sshll.u32 [#allocation7], 4
      %s45 = int_to_ptr.vmem [resolvable:$true] %s44
      %50 = dma.hbm_to_vmem [thread:$0]  %s2, 1024, %s45, [#allocation6], 64, 64, 4
    $region13: #{tpu_custom_call.1} parent=1 // pred_fallthru
      _
    // Predicated region
    $region14: #{tpu_custom_call.1} parent=1 // pred_check
      _
    $region15: #{tpu_custom_call.1} parent=1 // pred_check_branch
      %52 = sbr.rel (0) target = $region17
    $region16: #{tpu_custom_call.1} parent=1 // pred_region
      %s54 = ssub.s32 256, 256
      %55 = vsyncadd [#allocation9], %s54
      %s56 = sshll.u32 [#allocation8], 4
      %s57 = int_to_ptr.vmem [resolvable:$true] %s56
      %62 = dma.hbm_to_vmem [thread:$0]  %s3, 256, %s57, [#allocation9], 128, 128, 8
    $region17: #{tpu_custom_call.1} parent=1 // pred_fallthru
      _
    // Predicated region
    $region18: #{tpu_custom_call.1} parent=1 // pred_check
      _
    $region19: #{tpu_custom_call.1} parent=1 // pred_check_branch
      %64 = sbr.rel (0) target = $region21
    $region20: #{tpu_custom_call.1} parent=1 // pred_region
      %s66 = ssub.s32 512, 512
      %67 = vsyncadd [#allocation9], %s66
      %s68 = sshll.u32 [#allocation10], 4
      %s69 = int_to_ptr.vmem [resolvable:$true] %s68
      %74 = dma.hbm_to_vmem [thread:$0]  %s4, 512, %s69, [#allocation9], 128, 128, 8
    $region21: #{tpu_custom_call.1} parent=1 // pred_fallthru
      _
    // Predicated region
    $region22: #{tpu_custom_call.1} parent=1 // pred_check
      _
    $region23: #{tpu_custom_call.1} parent=1 // pred_check_branch
      %76 = sbr.rel (0) target = $region25
    $region24: #{tpu_custom_call.1} parent=1 // pred_region
      _
    $region25: #{tpu_custom_call.1} parent=1 // pred_fallthru
      _
    // Predicated region
    $region26: #{tpu_custom_call.1} parent=1 // pred_check
      _
    $region27: #{tpu_custom_call.1} parent=1 // pred_check_branch
      %78 = sbr.rel (0) target = $region29
    $region28: #{tpu_custom_call.1} parent=1 // pred_region
      %79 = dma.done [#allocation3], 256
    $region29: #{tpu_custom_call.1} parent=1 // pred_fallthru
      _
    // Predicated region
    $region30: #{tpu_custom_call.1} parent=1 // pred_check
      _
    $region31: #{tpu_custom_call.1} parent=1 // pred_check_branch
      %81 = sbr.rel (0) target = $region33
    $region32: #{tpu_custom_call.1} parent=1 // pred_region
      %82 = dma.done [#allocation6], 1024
    $region33: #{tpu_custom_call.1} parent=1 // pred_fallthru
      _
    // Predicated region
    $region34: #{tpu_custom_call.1} parent=1 // pred_check
      _
    $region35: #{tpu_custom_call.1} parent=1 // pred_check_branch
      %84 = sbr.rel (0) target = $region37
    $region36: #{tpu_custom_call.1} parent=1 // pred_region
      %85 = dma.done [#allocation6], 1024
    $region37: #{tpu_custom_call.1} parent=1 // pred_fallthru
      _
    // Predicated region
    $region38: #{tpu_custom_call.1} parent=1 // pred_check
      _
    $region39: #{tpu_custom_call.1} parent=1 // pred_check_branch
      %87 = sbr.rel (0) target = $region41
    $region40: #{tpu_custom_call.1} parent=1 // pred_region
      %88 = dma.done [#allocation9], 256
    $region41: #{tpu_custom_call.1} parent=1 // pred_fallthru
      _
    // Predicated region
    $region42: #{tpu_custom_call.1} parent=1 // pred_check
      _
    $region43: #{tpu_custom_call.1} parent=1 // pred_check_branch
      %90 = sbr.rel (0) target = $region45
    $region44: #{tpu_custom_call.1} parent=1 // pred_region
      %91 = dma.done [#allocation9], 512
    $region45: #{tpu_custom_call.1} parent=1 // pred_fallthru
      _
    %v92 = vld [vmem:[#allocation7] sm:$0xf]
    %v93 = vld [vmem:[#allocation7 + $0x4] sm:$0xf]
    %v94 = vld [vmem:[#allocation7 + $0x8] sm:$0xf]
    %v95 = vld [vmem:[#allocation7 + $0xc] sm:$0xf]
    %v96 = vld [vmem:[#allocation7 + $0x10] sm:$0xf]
    %v97 = vld [vmem:[#allocation7 + $0x14] sm:$0xf]
    %v98 = vld [vmem:[#allocation7 + $0x18] sm:$0xf]
    %v99 = vld [vmem:[#allocation7 + $0x1c] sm:$0xf]
    %v100 = vld [vmem:[#allocation7 + $0x20] sm:$0xf]
    %v101 = vld [vmem:[#allocation7 + $0x24] sm:$0xf]
    %v102 = vld [vmem:[#allocation7 + $0x28] sm:$0xf]
    %v103 = vld [vmem:[#allocation7 + $0x2c] sm:$0xf]
    %v104 = vld [vmem:[#allocation7 + $0x30] sm:$0xf]
    %v105 = vld [vmem:[#allocation7 + $0x34] sm:$0xf]
    %v106 = vld [vmem:[#allocation7 + $0x38] sm:$0xf]
    %v107 = vld [vmem:[#allocation7 + $0x3c] sm:$0xf]
    %v108 = vld [vmem:[#allocation5] sm:$0xf]
    %v109 = vld [vmem:[#allocation5 + $0x4] sm:$0xf]
    %v110 = vld [vmem:[#allocation5 + $0x8] sm:$0xf]
    %v111 = vld [vmem:[#allocation5 + $0xc] sm:$0xf]
    %v112 = vld [vmem:[#allocation5 + $0x10] sm:$0xf]
    %v113 = vld [vmem:[#allocation5 + $0x14] sm:$0xf]
    %v114 = vld [vmem:[#allocation5 + $0x18] sm:$0xf]
    %v115 = vld [vmem:[#allocation5 + $0x1c] sm:$0xf]
    %v116 = vld [vmem:[#allocation5 + $0x20] sm:$0xf]
    %v117 = vld [vmem:[#allocation5 + $0x24] sm:$0xf]
    %v118 = vld [vmem:[#allocation5 + $0x28] sm:$0xf]
    %v119 = vld [vmem:[#allocation5 + $0x2c] sm:$0xf]
    %v120 = vld [vmem:[#allocation5 + $0x30] sm:$0xf]
    %v121 = vld [vmem:[#allocation5 + $0x34] sm:$0xf]
    %v122 = vld [vmem:[#allocation5 + $0x38] sm:$0xf]
    %v123 = vld [vmem:[#allocation5 + $0x3c] sm:$0xf]
    %v124 = vld [vmem:[#allocation8] sm:$0xff]
    %v125 = vld [vmem:[#allocation8 + $0x8] sm:$0xff]
    %v128 = vcombine.high %v124, %v124
    %v130 = vunpack.c.l.s4 1966171168
    %v131 = vunpack.c.0.s8 %v130
    %v132 = vlaneseq
    %v133 = vshrl.u32 %v132, 7
    %v134 = vsub.s32 %v131, %v133
    %v135 = vrot.slane %v124, %v134
    %v137 = vunpack.c.l.s4 1966171168
    %v138 = vunpack.c.0.s8 %v137
    %v139 = vlaneseq
    %v140 = vshrl.u32 %v139, 7
    %v141 = vsub.s32 %v138, %v140
    %v142 = vrot.slane %v128, %v141
    %v143 = vcombine.high %v135, %v135
    %v144 = vcombine.high %v142, %v142
    %v146 = vunpack.c.l.s4 1966171168
    %v147 = vunpack.c.0.s8 %v146
    %v148 = vlaneseq
    %v149 = vshrl.u32 %v148, 7
    %v150 = vsub.s32 %v147, %v149
    %v151 = vrot.slane %v135, %v150
    %v153 = vunpack.c.l.s4 1966171168
    %v154 = vunpack.c.0.s8 %v153
    %v155 = vlaneseq
    %v156 = vshrl.u32 %v155, 7
    %v157 = vsub.s32 %v154, %v156
    %v158 = vrot.slane %v142, %v157
    %v160 = vunpack.c.l.s4 1966171168
    %v161 = vunpack.c.0.s8 %v160
    %v162 = vlaneseq
    %v163 = vshrl.u32 %v162, 7
    %v164 = vsub.s32 %v161, %v163
    %v165 = vrot.slane %v143, %v164
    %v167 = vunpack.c.l.s4 1966171168
    %v168 = vunpack.c.0.s8 %v167
    %v169 = vlaneseq
    %v170 = vshrl.u32 %v169, 7
    %v171 = vsub.s32 %v168, %v170
    %v172 = vrot.slane %v144, %v171
    %v173 = vcombine.high %v151, %v151
    %v174 = vcombine.high %v158, %v158
    %v175 = vcombine.high %v165, %v165
    %v176 = vcombine.high %v172, %v172
    %v177 = vcombine.high %v125, %v125
    %v179 = vunpack.c.l.s4 1966171168
    %v180 = vunpack.c.0.s8 %v179
    %v181 = vlaneseq
    %v182 = vshrl.u32 %v181, 7
    %v183 = vsub.s32 %v180, %v182
    %v184 = vrot.slane %v125, %v183
    %v186 = vunpack.c.l.s4 1966171168
    %v187 = vunpack.c.0.s8 %v186
    %v188 = vlaneseq
    %v189 = vshrl.u32 %v188, 7
    %v190 = vsub.s32 %v187, %v189
    %v191 = vrot.slane %v177, %v190
    %v192 = vcombine.high %v184, %v184
    %v193 = vcombine.high %v191, %v191
    %v195 = vunpack.c.l.s4 1966171168
    %v196 = vunpack.c.0.s8 %v195
    %v197 = vlaneseq
    %v198 = vshrl.u32 %v197, 7
    %v199 = vsub.s32 %v196, %v198
    %v200 = vrot.slane %v184, %v199
    %v202 = vunpack.c.l.s4 1966171168
    %v203 = vunpack.c.0.s8 %v202
    %v204 = vlaneseq
    %v205 = vshrl.u32 %v204, 7
    %v206 = vsub.s32 %v203, %v205
    %v207 = vrot.slane %v191, %v206
    %v209 = vunpack.c.l.s4 1966171168
    %v210 = vunpack.c.0.s8 %v209
    %v211 = vlaneseq
    %v212 = vshrl.u32 %v211, 7
    %v213 = vsub.s32 %v210, %v212
    %v214 = vrot.slane %v192, %v213
    %v216 = vunpack.c.l.s4 1966171168
    %v217 = vunpack.c.0.s8 %v216
    %v218 = vlaneseq
    %v219 = vshrl.u32 %v218, 7
    %v220 = vsub.s32 %v217, %v219
    %v221 = vrot.slane %v193, %v220
    %v222 = vcombine.high %v200, %v200
    %v223 = vcombine.high %v207, %v207
    %v224 = vcombine.high %v214, %v214
    %v225 = vcombine.high %v221, %v221
    %v226 = vlaneseq
    %v227 = vshrl.u32 %v226, 7
    %v228 = vsub.s32 0, %v227
    %v229 = vrot.slane %v151, %v228
    %v230 = vlaneseq
    %v231 = vshrl.u32 %v230, 7
    %v232 = vsub.s32 0, %v231
    %v233 = vrot.slane %v165, %v232
    %v234 = vlaneseq
    %v235 = vshrl.u32 %v234, 7
    %v236 = vsub.s32 0, %v235
    %v237 = vrot.slane %v173, %v236
    %v238 = vlaneseq
    %v239 = vshrl.u32 %v238, 7
    %v240 = vsub.s32 0, %v239
    %v241 = vrot.slane %v175, %v240
    %v242 = vlaneseq
    %v243 = vshrl.u32 %v242, 7
    %v244 = vsub.s32 0, %v243
    %v245 = vrot.slane %v158, %v244
    %v246 = vlaneseq
    %v247 = vshrl.u32 %v246, 7
    %v248 = vsub.s32 0, %v247
    %v249 = vrot.slane %v172, %v248
    %v250 = vlaneseq
    %v251 = vshrl.u32 %v250, 7
    %v252 = vsub.s32 0, %v251
    %v253 = vrot.slane %v174, %v252
    %v254 = vlaneseq
    %v255 = vshrl.u32 %v254, 7
    %v256 = vsub.s32 0, %v255
    %v257 = vrot.slane %v176, %v256
    %v258 = vlaneseq
    %v259 = vshrl.u32 %v258, 7
    %v260 = vsub.s32 0, %v259
    %v261 = vrot.slane %v200, %v260
    %v262 = vlaneseq
    %v263 = vshrl.u32 %v262, 7
    %v264 = vsub.s32 0, %v263
    %v265 = vrot.slane %v214, %v264
    %v266 = vlaneseq
    %v267 = vshrl.u32 %v266, 7
    %v268 = vsub.s32 0, %v267
    %v269 = vrot.slane %v222, %v268
    %v270 = vlaneseq
    %v271 = vshrl.u32 %v270, 7
    %v272 = vsub.s32 0, %v271
    %v273 = vrot.slane %v224, %v272
    %v274 = vlaneseq
    %v275 = vshrl.u32 %v274, 7
    %v276 = vsub.s32 0, %v275
    %v277 = vrot.slane %v207, %v276
    %v278 = vlaneseq
    %v279 = vshrl.u32 %v278, 7
    %v280 = vsub.s32 0, %v279
    %v281 = vrot.slane %v221, %v280
    %v282 = vlaneseq
    %v283 = vshrl.u32 %v282, 7
    %v284 = vsub.s32 0, %v283
    %v285 = vrot.slane %v223, %v284
    %v286 = vlaneseq
    %v287 = vshrl.u32 %v286, 7
    %v288 = vsub.s32 0, %v287
    %v289 = vrot.slane %v225, %v288
    %v306 = vmul.f32 %v92, %v229
    %v307 = vmul.f32 %v93, %v233
    %v308 = vmul.f32 %v94, %v237
    %v309 = vmul.f32 %v95, %v241
    %v310 = vmul.f32 %v96, %v245
    %v311 = vmul.f32 %v97, %v249
    %v312 = vmul.f32 %v98, %v253
    %v313 = vmul.f32 %v99, %v257
    %v314 = vmul.f32 %v100, %v261
    %v315 = vmul.f32 %v101, %v265
    %v316 = vmul.f32 %v102, %v269
    %v317 = vmul.f32 %v103, %v273
    %v318 = vmul.f32 %v104, %v277
    %v319 = vmul.f32 %v105, %v281
    %v320 = vmul.f32 %v106, %v285
    %v321 = vmul.f32 %v107, %v289
    %vm322 = vcmask 257024
    %v323 = vsel %vm322, %v306, 0.0
    %324 = vadd.xlane.f32.xlu0 %v323
    %v325 = vpop.xlane.xlu0 %324
    %v326 = vsel %vm322, %v307, 0.0
    %327 = vadd.xlane.f32.xlu0 %v326
    %v328 = vpop.xlane.xlu0 %327
    %v329 = vsel %vm322, %v308, 0.0
    %330 = vadd.xlane.f32.xlu0 %v329
    %v331 = vpop.xlane.xlu0 %330
    %v332 = vsel %vm322, %v309, 0.0
    %333 = vadd.xlane.f32.xlu0 %v332
    %v334 = vpop.xlane.xlu0 %333
    %v335 = vsel %vm322, %v310, 0.0
    %336 = vadd.xlane.f32.xlu0 %v335
    %v337 = vpop.xlane.xlu0 %336
    %v338 = vsel %vm322, %v311, 0.0
    %339 = vadd.xlane.f32.xlu0 %v338
    %v340 = vpop.xlane.xlu0 %339
    %v341 = vsel %vm322, %v312, 0.0
    %342 = vadd.xlane.f32.xlu0 %v341
    %v343 = vpop.xlane.xlu0 %342
    %v344 = vsel %vm322, %v313, 0.0
    %345 = vadd.xlane.f32.xlu0 %v344
    %v346 = vpop.xlane.xlu0 %345
    %v347 = vsel %vm322, %v314, 0.0
    %348 = vadd.xlane.f32.xlu0 %v347
    %v349 = vpop.xlane.xlu0 %348
    %v350 = vsel %vm322, %v315, 0.0
    %351 = vadd.xlane.f32.xlu0 %v350
    %v352 = vpop.xlane.xlu0 %351
    %v353 = vsel %vm322, %v316, 0.0
    %354 = vadd.xlane.f32.xlu0 %v353
    %v355 = vpop.xlane.xlu0 %354
    %v356 = vsel %vm322, %v317, 0.0
    %357 = vadd.xlane.f32.xlu0 %v356
    %v358 = vpop.xlane.xlu0 %357
    %v359 = vsel %vm322, %v318, 0.0
    %360 = vadd.xlane.f32.xlu0 %v359
    %v361 = vpop.xlane.xlu0 %360
    %v362 = vsel %vm322, %v319, 0.0
    %363 = vadd.xlane.f32.xlu0 %v362
    %v364 = vpop.xlane.xlu0 %363
    %v365 = vsel %vm322, %v320, 0.0
    %366 = vadd.xlane.f32.xlu0 %v365
    %v367 = vpop.xlane.xlu0 %366
    %v368 = vsel %vm322, %v321, 0.0
    %369 = vadd.xlane.f32.xlu0 %v368
    %v370 = vpop.xlane.xlu0 %369
    %v387 = vlaneseq
    %v388 = vand.u32 %v387, 127
    %v389 = vlaneseq
    %v390 = vshrl.u32 %v389, 7
    %v391 = vsub.s32 %v388, %v390
    %v392 = vrot.slane %v325, %v391
    %v393 = vlaneseq
    %v394 = vshrl.u32 %v393, 7
    %v395 = vsub.s32 %v388, %v394
    %v396 = vrot.slane %v328, %v395
    %v397 = vlaneseq
    %v398 = vshrl.u32 %v397, 7
    %v399 = vsub.s32 %v388, %v398
    %v400 = vrot.slane %v331, %v399
    %v401 = vlaneseq
    %v402 = vshrl.u32 %v401, 7
    %v403 = vsub.s32 %v388, %v402
    %v404 = vrot.slane %v334, %v403
    %v405 = vlaneseq
    %v406 = vshrl.u32 %v405, 7
    %v407 = vsub.s32 %v388, %v406
    %v408 = vrot.slane %v337, %v407
    %v409 = vlaneseq
    %v410 = vshrl.u32 %v409, 7
    %v411 = vsub.s32 %v388, %v410
    %v412 = vrot.slane %v340, %v411
    %v413 = vlaneseq
    %v414 = vshrl.u32 %v413, 7
    %v415 = vsub.s32 %v388, %v414
    %v416 = vrot.slane %v343, %v415
    %v417 = vlaneseq
    %v418 = vshrl.u32 %v417, 7
    %v419 = vsub.s32 %v388, %v418
    %v420 = vrot.slane %v346, %v419
    %v421 = vlaneseq
    %v422 = vshrl.u32 %v421, 7
    %v423 = vsub.s32 %v388, %v422
    %v424 = vrot.slane %v349, %v423
    %v425 = vlaneseq
    %v426 = vshrl.u32 %v425, 7
    %v427 = vsub.s32 %v388, %v426
    %v428 = vrot.slane %v352, %v427
    %v429 = vlaneseq
    %v430 = vshrl.u32 %v429, 7
    %v431 = vsub.s32 %v388, %v430
    %v432 = vrot.slane %v355, %v431
    %v433 = vlaneseq
    %v434 = vshrl.u32 %v433, 7
    %v435 = vsub.s32 %v388, %v434
    %v436 = vrot.slane %v358, %v435
    %v437 = vlaneseq
    %v438 = vshrl.u32 %v437, 7
    %v439 = vsub.s32 %v388, %v438
    %v440 = vrot.slane %v361, %v439
    %v441 = vlaneseq
    %v442 = vshrl.u32 %v441, 7
    %v443 = vsub.s32 %v388, %v442
    %v444 = vrot.slane %v364, %v443
    %v445 = vlaneseq
    %v446 = vshrl.u32 %v445, 7
    %v447 = vsub.s32 %v388, %v446
    %v448 = vrot.slane %v367, %v447
    %v449 = vlaneseq
    %v450 = vshrl.u32 %v449, 7
    %v451 = vsub.s32 %v388, %v450
    %v452 = vrot.slane %v370, %v451
    %vm453 = vcmask 1041409
    %v454 = vsel %vm453, %v396, %v392
    %vm455 = vcmask 1042434
    %v456 = vsel %vm455, %v400, %v454
    %vm457 = vcmask 1043459
    %v458 = vsel %vm457, %v404, %v456
    %vm459 = vcmask 1044484
    %v460 = vsel %vm459, %v408, %v458
    %vm461 = vcmask 1045509
    %v462 = vsel %vm461, %v412, %v460
    %vm463 = vcmask 1046534
    %v464 = vsel %vm463, %v416, %v462
    %vm465 = vcmask 1047559
    %v466 = vsel %vm465, %v420, %v464
    %v467 = vsel %vm453, %v428, %v424
    %v468 = vsel %vm455, %v432, %v467
    %v469 = vsel %vm457, %v436, %v468
    %v470 = vsel %vm459, %v440, %v469
    %v471 = vsel %vm461, %v444, %v470
    %v472 = vsel %vm463, %v448, %v471
    %v473 = vsel %vm465, %v452, %v472
    %vm476 = vcmask 31744
    %v477 = vsel %vm476, %v466, -inf
    %478 = vmax.xlane.f32.xlu0 %v477
    %v479 = vpop.xlane.xlu0 %478
    %v480 = vsel %vm476, %v473, -inf
    %481 = vmax.xlane.f32.xlu0 %v480
    %v482 = vpop.xlane.xlu0 %481
    %v485 = vlaneseq
    %v486 = vshrl.u32 %v485, 7
    %v487 = vsub.s32 0, %v486
    %v488 = vrot.slane %v479, %v487
    %v489 = vlaneseq
    %v490 = vshrl.u32 %v489, 7
    %v491 = vsub.s32 1, %v490
    %v492 = vrot.slane %v479, %v491
    %v493 = vlaneseq
    %v494 = vshrl.u32 %v493, 7
    %v495 = vsub.s32 2, %v494
    %v496 = vrot.slane %v479, %v495
    %v497 = vlaneseq
    %v498 = vshrl.u32 %v497, 7
    %v499 = vsub.s32 3, %v498
    %v500 = vrot.slane %v479, %v499
    %v501 = vlaneseq
    %v502 = vshrl.u32 %v501, 7
    %v503 = vsub.s32 4, %v502
    %v504 = vrot.slane %v479, %v503
    %v505 = vlaneseq
    %v506 = vshrl.u32 %v505, 7
    %v507 = vsub.s32 5, %v506
    %v508 = vrot.slane %v479, %v507
    %v509 = vlaneseq
    %v510 = vshrl.u32 %v509, 7
    %v511 = vsub.s32 6, %v510
    %v512 = vrot.slane %v479, %v511
    %v513 = vlaneseq
    %v514 = vshrl.u32 %v513, 7
    %v515 = vsub.s32 7, %v514
    %v516 = vrot.slane %v479, %v515
    %v517 = vlaneseq
    %v518 = vshrl.u32 %v517, 7
    %v519 = vsub.s32 0, %v518
    %v520 = vrot.slane %v482, %v519
    %v521 = vlaneseq
    %v522 = vshrl.u32 %v521, 7
    %v523 = vsub.s32 1, %v522
    %v524 = vrot.slane %v482, %v523
    %v525 = vlaneseq
    %v526 = vshrl.u32 %v525, 7
    %v527 = vsub.s32 2, %v526
    %v528 = vrot.slane %v482, %v527
    %v529 = vlaneseq
    %v530 = vshrl.u32 %v529, 7
    %v531 = vsub.s32 3, %v530
    %v532 = vrot.slane %v482, %v531
    %v533 = vlaneseq
    %v534 = vshrl.u32 %v533, 7
    %v535 = vsub.s32 4, %v534
    %v536 = vrot.slane %v482, %v535
    %v537 = vlaneseq
    %v538 = vshrl.u32 %v537, 7
    %v539 = vsub.s32 5, %v538
    %v540 = vrot.slane %v482, %v539
    %v541 = vlaneseq
    %v542 = vshrl.u32 %v541, 7
    %v543 = vsub.s32 6, %v542
    %v544 = vrot.slane %v482, %v543
    %v545 = vlaneseq
    %v546 = vshrl.u32 %v545, 7
    %v547 = vsub.s32 7, %v546
    %v548 = vrot.slane %v482, %v547
    %v565 = vsub.f32 %v325, %v488
    %v566 = vsub.f32 %v328, %v492
    %v567 = vsub.f32 %v331, %v496
    %v568 = vsub.f32 %v334, %v500
    %v569 = vsub.f32 %v337, %v504
    %v570 = vsub.f32 %v340, %v508
    %v571 = vsub.f32 %v343, %v512
    %v572 = vsub.f32 %v346, %v516
    %v573 = vsub.f32 %v349, %v520
    %v574 = vsub.f32 %v352, %v524
    %v575 = vsub.f32 %v355, %v528
    %v576 = vsub.f32 %v358, %v532
    %v577 = vsub.f32 %v361, %v536
    %v578 = vsub.f32 %v364, %v540
    %v579 = vsub.f32 %v367, %v544
    %v580 = vsub.f32 %v370, %v548
    %v581 = vmul.f32 %v565, 1.442695
    %v582 = vpow.pop %v581
    %v583 = vmul.f32 %v566, 1.442695
    %v584 = vpow.pop %v583
    %v585 = vmul.f32 %v567, 1.442695
    %v586 = vpow.pop %v585
    %v587 = vmul.f32 %v568, 1.442695
    %v588 = vpow.pop %v587
    %v589 = vmul.f32 %v569, 1.442695
    %v590 = vpow.pop %v589
    %v591 = vmul.f32 %v570, 1.442695
    %v592 = vpow.pop %v591
    %v593 = vmul.f32 %v571, 1.442695
    %v594 = vpow.pop %v593
    %v595 = vmul.f32 %v572, 1.442695
    %v596 = vpow.pop %v595
    %v597 = vmul.f32 %v573, 1.442695
    %v598 = vpow.pop %v597
    %v599 = vmul.f32 %v574, 1.442695
    %v600 = vpow.pop %v599
    %v601 = vmul.f32 %v575, 1.442695
    %v602 = vpow.pop %v601
    %v603 = vmul.f32 %v576, 1.442695
    %v604 = vpow.pop %v603
    %v605 = vmul.f32 %v577, 1.442695
    %v606 = vpow.pop %v605
    %v607 = vmul.f32 %v578, 1.442695
    %v608 = vpow.pop %v607
    %v609 = vmul.f32 %v579, 1.442695
    %v610 = vpow.pop %v609
    %v611 = vmul.f32 %v580, 1.442695
    %v612 = vpow.pop %v611
    %629 = vset.pattern.permute.xlu0 0
    %630 = vperm.xlu0 %629, %v582
    %v631 = vpop.permute.xlu0 %630
    %632 = vset.pattern.permute.xlu0 0
    %633 = vperm.xlu0 %632, %v584
    %v634 = vpop.permute.xlu0 %633
    %635 = vset.pattern.permute.xlu0 0
    %636 = vperm.xlu0 %635, %v586
    %v637 = vpop.permute.xlu0 %636
    %638 = vset.pattern.permute.xlu0 0
    %639 = vperm.xlu0 %638, %v588
    %v640 = vpop.permute.xlu0 %639
    %641 = vset.pattern.permute.xlu0 0
    %642 = vperm.xlu0 %641, %v590
    %v643 = vpop.permute.xlu0 %642
    %644 = vset.pattern.permute.xlu0 0
    %645 = vperm.xlu0 %644, %v592
    %v646 = vpop.permute.xlu0 %645
    %647 = vset.pattern.permute.xlu0 0
    %648 = vperm.xlu0 %647, %v594
    %v649 = vpop.permute.xlu0 %648
    %650 = vset.pattern.permute.xlu0 0
    %651 = vperm.xlu0 %650, %v596
    %v652 = vpop.permute.xlu0 %651
    %653 = vset.pattern.permute.xlu0 0
    %654 = vperm.xlu0 %653, %v598
    %v655 = vpop.permute.xlu0 %654
    %656 = vset.pattern.permute.xlu0 0
    %657 = vperm.xlu0 %656, %v600
    %v658 = vpop.permute.xlu0 %657
    %659 = vset.pattern.permute.xlu0 0
    %660 = vperm.xlu0 %659, %v602
    %v661 = vpop.permute.xlu0 %660
    %662 = vset.pattern.permute.xlu0 0
    %663 = vperm.xlu0 %662, %v604
    %v664 = vpop.permute.xlu0 %663
    %665 = vset.pattern.permute.xlu0 0
    %666 = vperm.xlu0 %665, %v606
    %v667 = vpop.permute.xlu0 %666
    %668 = vset.pattern.permute.xlu0 0
    %669 = vperm.xlu0 %668, %v608
    %v670 = vpop.permute.xlu0 %669
    %671 = vset.pattern.permute.xlu0 0
    %672 = vperm.xlu0 %671, %v610
    %v673 = vpop.permute.xlu0 %672
    %674 = vset.pattern.permute.xlu0 0
    %675 = vperm.xlu0 %674, %v612
    %v676 = vpop.permute.xlu0 %675
    %v677 = vlaneseq
    %v678 = vshrl.u32 %v677, 7
    %v679 = vsub.s32 %v388, %v678
    %v680 = vrot.slane %v631, %v679
    %v681 = vlaneseq
    %v682 = vshrl.u32 %v681, 7
    %v683 = vsub.s32 %v388, %v682
    %v684 = vrot.slane %v634, %v683
    %v685 = vlaneseq
    %v686 = vshrl.u32 %v685, 7
    %v687 = vsub.s32 %v388, %v686
    %v688 = vrot.slane %v637, %v687
    %v689 = vlaneseq
    %v690 = vshrl.u32 %v689, 7
    %v691 = vsub.s32 %v388, %v690
    %v692 = vrot.slane %v640, %v691
    %v693 = vlaneseq
    %v694 = vshrl.u32 %v693, 7
    %v695 = vsub.s32 %v388, %v694
    %v696 = vrot.slane %v643, %v695
    %v697 = vlaneseq
    %v698 = vshrl.u32 %v697, 7
    %v699 = vsub.s32 %v388, %v698
    %v700 = vrot.slane %v646, %v699
    %v701 = vlaneseq
    %v702 = vshrl.u32 %v701, 7
    %v703 = vsub.s32 %v388, %v702
    %v704 = vrot.slane %v649, %v703
    %v705 = vlaneseq
    %v706 = vshrl.u32 %v705, 7
    %v707 = vsub.s32 %v388, %v706
    %v708 = vrot.slane %v652, %v707
    %v709 = vlaneseq
    %v710 = vshrl.u32 %v709, 7
    %v711 = vsub.s32 %v388, %v710
    %v712 = vrot.slane %v655, %v711
    %v713 = vlaneseq
    %v714 = vshrl.u32 %v713, 7
    %v715 = vsub.s32 %v388, %v714
    %v716 = vrot.slane %v658, %v715
    %v717 = vlaneseq
    %v718 = vshrl.u32 %v717, 7
    %v719 = vsub.s32 %v388, %v718
    %v720 = vrot.slane %v661, %v719
    %v721 = vlaneseq
    %v722 = vshrl.u32 %v721, 7
    %v723 = vsub.s32 %v388, %v722
    %v724 = vrot.slane %v664, %v723
    %v725 = vlaneseq
    %v726 = vshrl.u32 %v725, 7
    %v727 = vsub.s32 %v388, %v726
    %v728 = vrot.slane %v667, %v727
    %v729 = vlaneseq
    %v730 = vshrl.u32 %v729, 7
    %v731 = vsub.s32 %v388, %v730
    %v732 = vrot.slane %v670, %v731
    %v733 = vlaneseq
    %v734 = vshrl.u32 %v733, 7
    %v735 = vsub.s32 %v388, %v734
    %v736 = vrot.slane %v673, %v735
    %v737 = vlaneseq
    %v738 = vshrl.u32 %v737, 7
    %v739 = vsub.s32 %v388, %v738
    %v740 = vrot.slane %v676, %v739
    %v741 = vsel %vm453, %v684, %v680
    %v742 = vsel %vm455, %v688, %v741
    %v743 = vsel %vm457, %v692, %v742
    %v744 = vsel %vm459, %v696, %v743
    %v745 = vsel %vm461, %v700, %v744
    %v746 = vsel %vm463, %v704, %v745
    %v747 = vsel %vm465, %v708, %v746
    %v748 = vsel %vm453, %v716, %v712
    %v749 = vsel %vm455, %v720, %v748
    %v750 = vsel %vm457, %v724, %v749
    %v751 = vsel %vm459, %v728, %v750
    %v752 = vsel %vm461, %v732, %v751
    %v753 = vsel %vm463, %v736, %v752
    %v754 = vsel %vm465, %v740, %v753
    %v757 = vsel %vm476, %v747, 0.0
    %758 = vadd.xlane.f32.xlu0 %v757
    %v759 = vpop.xlane.xlu0 %758
    %v760 = vsel %vm476, %v754, 0.0
    %761 = vadd.xlane.f32.xlu0 %v760
    %v762 = vpop.xlane.xlu0 %761
    %v763 = vrcp.pop %v759
    %v764 = vrcp.pop %v762
    %v767 = vlaneseq
    %v768 = vshrl.u32 %v767, 7
    %v769 = vsub.s32 0, %v768
    %v770 = vrot.slane %v763, %v769
    %v771 = vlaneseq
    %v772 = vshrl.u32 %v771, 7
    %v773 = vsub.s32 1, %v772
    %v774 = vrot.slane %v763, %v773
    %v775 = vlaneseq
    %v776 = vshrl.u32 %v775, 7
    %v777 = vsub.s32 2, %v776
    %v778 = vrot.slane %v763, %v777
    %v779 = vlaneseq
    %v780 = vshrl.u32 %v779, 7
    %v781 = vsub.s32 3, %v780
    %v782 = vrot.slane %v763, %v781
    %v783 = vlaneseq
    %v784 = vshrl.u32 %v783, 7
    %v785 = vsub.s32 4, %v784
    %v786 = vrot.slane %v763, %v785
    %v787 = vlaneseq
    %v788 = vshrl.u32 %v787, 7
    %v789 = vsub.s32 5, %v788
    %v790 = vrot.slane %v763, %v789
    %v791 = vlaneseq
    %v792 = vshrl.u32 %v791, 7
    %v793 = vsub.s32 6, %v792
    %v794 = vrot.slane %v763, %v793
    %v795 = vlaneseq
    %v796 = vshrl.u32 %v795, 7
    %v797 = vsub.s32 7, %v796
    %v798 = vrot.slane %v763, %v797
    %v799 = vlaneseq
    %v800 = vshrl.u32 %v799, 7
    %v801 = vsub.s32 0, %v800
    %v802 = vrot.slane %v764, %v801
    %v803 = vlaneseq
    %v804 = vshrl.u32 %v803, 7
    %v805 = vsub.s32 1, %v804
    %v806 = vrot.slane %v764, %v805
    %v807 = vlaneseq
    %v808 = vshrl.u32 %v807, 7
    %v809 = vsub.s32 2, %v808
    %v810 = vrot.slane %v764, %v809
    %v811 = vlaneseq
    %v812 = vshrl.u32 %v811, 7
    %v813 = vsub.s32 3, %v812
    %v814 = vrot.slane %v764, %v813
    %v815 = vlaneseq
    %v816 = vshrl.u32 %v815, 7
    %v817 = vsub.s32 4, %v816
    %v818 = vrot.slane %v764, %v817
    %v819 = vlaneseq
    %v820 = vshrl.u32 %v819, 7
    %v821 = vsub.s32 5, %v820
    %v822 = vrot.slane %v764, %v821
    %v823 = vlaneseq
    %v824 = vshrl.u32 %v823, 7
    %v825 = vsub.s32 6, %v824
    %v826 = vrot.slane %v764, %v825
    %v827 = vlaneseq
    %v828 = vshrl.u32 %v827, 7
    %v829 = vsub.s32 7, %v828
    %v830 = vrot.slane %v764, %v829
    %v847 = vmul.f32 %v582, %v770
    %v848 = vmul.f32 %v584, %v774
    %v849 = vmul.f32 %v586, %v778
    %v850 = vmul.f32 %v588, %v782
    %v851 = vmul.f32 %v590, %v786
    %v852 = vmul.f32 %v592, %v790
    %v853 = vmul.f32 %v594, %v794
    %v854 = vmul.f32 %v596, %v798
    %v855 = vmul.f32 %v598, %v802
    %v856 = vmul.f32 %v600, %v806
    %v857 = vmul.f32 %v602, %v810
    %v858 = vmul.f32 %v604, %v814
    %v859 = vmul.f32 %v606, %v818
    %v860 = vmul.f32 %v608, %v822
    %v861 = vmul.f32 %v610, %v826
    %v862 = vmul.f32 %v612, %v830
    %864 = vset.pattern.permute.xlu0 0
    %865 = vperm.xlu0 %864, %v847
    %v866 = vpop.permute.xlu0 %865
    %869 = vset.pattern.permute.xlu0 0
    %870 = vperm.xlu0 %869, %v848
    %v871 = vpop.permute.xlu0 %870
    %874 = vset.pattern.permute.xlu0 0
    %875 = vperm.xlu0 %874, %v849
    %v876 = vpop.permute.xlu0 %875
    %879 = vset.pattern.permute.xlu0 0
    %880 = vperm.xlu0 %879, %v850
    %v881 = vpop.permute.xlu0 %880
    %884 = vset.pattern.permute.xlu0 0
    %885 = vperm.xlu0 %884, %v851
    %v886 = vpop.permute.xlu0 %885
    %889 = vset.pattern.permute.xlu0 0
    %890 = vperm.xlu0 %889, %v852
    %v891 = vpop.permute.xlu0 %890
    %894 = vset.pattern.permute.xlu0 0
    %895 = vperm.xlu0 %894, %v853
    %v896 = vpop.permute.xlu0 %895
    %899 = vset.pattern.permute.xlu0 0
    %900 = vperm.xlu0 %899, %v854
    %v901 = vpop.permute.xlu0 %900
    %904 = vset.pattern.permute.xlu0 0
    %905 = vperm.xlu0 %904, %v855
    %v906 = vpop.permute.xlu0 %905
    %909 = vset.pattern.permute.xlu0 0
    %910 = vperm.xlu0 %909, %v856
    %v911 = vpop.permute.xlu0 %910
    %914 = vset.pattern.permute.xlu0 0
    %915 = vperm.xlu0 %914, %v857
    %v916 = vpop.permute.xlu0 %915
    %919 = vset.pattern.permute.xlu0 0
    %920 = vperm.xlu0 %919, %v858
    %v921 = vpop.permute.xlu0 %920
    %924 = vset.pattern.permute.xlu0 0
    %925 = vperm.xlu0 %924, %v859
    %v926 = vpop.permute.xlu0 %925
    %929 = vset.pattern.permute.xlu0 0
    %930 = vperm.xlu0 %929, %v860
    %v931 = vpop.permute.xlu0 %930
    %934 = vset.pattern.permute.xlu0 0
    %935 = vperm.xlu0 %934, %v861
    %v936 = vpop.permute.xlu0 %935
    %939 = vset.pattern.permute.xlu0 0
    %940 = vperm.xlu0 %939, %v862
    %v941 = vpop.permute.xlu0 %940
    %v943 = vmul.f32 %v866, %v108
    %v944 = vmul.f32 %v871, %v109
    %v945 = vmul.f32 %v876, %v110
    %v946 = vmul.f32 %v881, %v111
    %v947 = vmul.f32 %v886, %v112
    %v948 = vmul.f32 %v891, %v113
    %v949 = vmul.f32 %v896, %v114
    %v950 = vmul.f32 %v901, %v115
    %v951 = vmul.f32 %v906, %v116
    %v952 = vmul.f32 %v911, %v117
    %v953 = vmul.f32 %v916, %v118
    %v954 = vmul.f32 %v921, %v119
    %v955 = vmul.f32 %v926, %v120
    %v956 = vmul.f32 %v931, %v121
    %v957 = vmul.f32 %v936, %v122
    %v958 = vmul.f32 %v941, %v123
    %v959 = vsel %vm322, %v943, 0.0
    %v960 = vrot.slane %v959, 4
    %v961 = vadd.f32 %v959, %v960
    %v962 = vrot.slane %v961, 2
    %v963 = vadd.f32 %v961, %v962
    %v964 = vrot.slane %v963, 1
    %v965 = vadd.f32 %v963, %v964
    %v966 = vsel %vm322, %v944, 0.0
    %v967 = vrot.slane %v966, 4
    %v968 = vadd.f32 %v966, %v967
    %v969 = vrot.slane %v968, 2
    %v970 = vadd.f32 %v968, %v969
    %v971 = vrot.slane %v970, 1
    %v972 = vadd.f32 %v970, %v971
    %v973 = vsel %vm322, %v945, 0.0
    %v974 = vrot.slane %v973, 4
    %v975 = vadd.f32 %v973, %v974
    %v976 = vrot.slane %v975, 2
    %v977 = vadd.f32 %v975, %v976
    %v978 = vrot.slane %v977, 1
    %v979 = vadd.f32 %v977, %v978
    %v980 = vsel %vm322, %v946, 0.0
    %v981 = vrot.slane %v980, 4
    %v982 = vadd.f32 %v980, %v981
    %v983 = vrot.slane %v982, 2
    %v984 = vadd.f32 %v982, %v983
    %v985 = vrot.slane %v984, 1
    %v986 = vadd.f32 %v984, %v985
    %v987 = vsel %vm322, %v947, 0.0
    %v988 = vrot.slane %v987, 4
    %v989 = vadd.f32 %v987, %v988
    %v990 = vrot.slane %v989, 2
    %v991 = vadd.f32 %v989, %v990
    %v992 = vrot.slane %v991, 1
    %v993 = vadd.f32 %v991, %v992
    %v994 = vsel %vm322, %v948, 0.0
    %v995 = vrot.slane %v994, 4
    %v996 = vadd.f32 %v994, %v995
    %v997 = vrot.slane %v996, 2
    %v998 = vadd.f32 %v996, %v997
    %v999 = vrot.slane %v998, 1
    %v1000 = vadd.f32 %v998, %v999
    %v1001 = vsel %vm322, %v949, 0.0
    %v1002 = vrot.slane %v1001, 4
    %v1003 = vadd.f32 %v1001, %v1002
    %v1004 = vrot.slane %v1003, 2
    %v1005 = vadd.f32 %v1003, %v1004
    %v1006 = vrot.slane %v1005, 1
    %v1007 = vadd.f32 %v1005, %v1006
    %v1008 = vsel %vm322, %v950, 0.0
    %v1009 = vrot.slane %v1008, 4
    %v1010 = vadd.f32 %v1008, %v1009
    %v1011 = vrot.slane %v1010, 2
    %v1012 = vadd.f32 %v1010, %v1011
    %v1013 = vrot.slane %v1012, 1
    %v1014 = vadd.f32 %v1012, %v1013
    %v1015 = vsel %vm322, %v951, 0.0
    %v1016 = vrot.slane %v1015, 4
    %v1017 = vadd.f32 %v1015, %v1016
    %v1018 = vrot.slane %v1017, 2
    %v1019 = vadd.f32 %v1017, %v1018
    %v1020 = vrot.slane %v1019, 1
    %v1021 = vadd.f32 %v1019, %v1020
    %v1022 = vsel %vm322, %v952, 0.0
    %v1023 = vrot.slane %v1022, 4
    %v1024 = vadd.f32 %v1022, %v1023
    %v1025 = vrot.slane %v1024, 2
    %v1026 = vadd.f32 %v1024, %v1025
    %v1027 = vrot.slane %v1026, 1
    %v1028 = vadd.f32 %v1026, %v1027
    %v1029 = vsel %vm322, %v953, 0.0
    %v1030 = vrot.slane %v1029, 4
    %v1031 = vadd.f32 %v1029, %v1030
    %v1032 = vrot.slane %v1031, 2
    %v1033 = vadd.f32 %v1031, %v1032
    %v1034 = vrot.slane %v1033, 1
    %v1035 = vadd.f32 %v1033, %v1034
    %v1036 = vsel %vm322, %v954, 0.0
    %v1037 = vrot.slane %v1036, 4
    %v1038 = vadd.f32 %v1036, %v1037
    %v1039 = vrot.slane %v1038, 2
    %v1040 = vadd.f32 %v1038, %v1039
    %v1041 = vrot.slane %v1040, 1
    %v1042 = vadd.f32 %v1040, %v1041
    %v1043 = vsel %vm322, %v955, 0.0
    %v1044 = vrot.slane %v1043, 4
    %v1045 = vadd.f32 %v1043, %v1044
    %v1046 = vrot.slane %v1045, 2
    %v1047 = vadd.f32 %v1045, %v1046
    %v1048 = vrot.slane %v1047, 1
    %v1049 = vadd.f32 %v1047, %v1048
    %v1050 = vsel %vm322, %v956, 0.0
    %v1051 = vrot.slane %v1050, 4
    %v1052 = vadd.f32 %v1050, %v1051
    %v1053 = vrot.slane %v1052, 2
    %v1054 = vadd.f32 %v1052, %v1053
    %v1055 = vrot.slane %v1054, 1
    %v1056 = vadd.f32 %v1054, %v1055
    %v1057 = vsel %vm322, %v957, 0.0
    %v1058 = vrot.slane %v1057, 4
    %v1059 = vadd.f32 %v1057, %v1058
    %v1060 = vrot.slane %v1059, 2
    %v1061 = vadd.f32 %v1059, %v1060
    %v1062 = vrot.slane %v1061, 1
    %v1063 = vadd.f32 %v1061, %v1062
    %v1064 = vsel %vm322, %v958, 0.0
    %v1065 = vrot.slane %v1064, 4
    %v1066 = vadd.f32 %v1064, %v1065
    %v1067 = vrot.slane %v1066, 2
    %v1068 = vadd.f32 %v1066, %v1067
    %v1069 = vrot.slane %v1068, 1
    %v1070 = vadd.f32 %v1068, %v1069
    %v1071 = vld [vmem:[#allocation2] sm:$0xff]
    %v1072 = vld [vmem:[#allocation2 + $0x8] sm:$0xff]
    %v1089 = vsel %vm453, %v972, %v965
    %v1090 = vsel %vm455, %v979, %v1089
    %v1091 = vsel %vm457, %v986, %v1090
    %v1092 = vsel %vm459, %v993, %v1091
    %v1093 = vsel %vm461, %v1000, %v1092
    %v1094 = vsel %vm463, %v1007, %v1093
    %v1095 = vsel %vm465, %v1014, %v1094
    %v1096 = vsel %vm453, %v1028, %v1021
    %v1097 = vsel %vm455, %v1035, %v1096
    %v1098 = vsel %vm457, %v1042, %v1097
    %v1099 = vsel %vm459, %v1049, %v1098
    %v1100 = vsel %vm461, %v1056, %v1099
    %v1101 = vsel %vm463, %v1063, %v1100
    %v1102 = vsel %vm465, %v1070, %v1101
    %v1105 = vadd.f32 %v1071, %v1095
    %v1106 = vadd.f32 %v1072, %v1102
    %v1107 = vld [vmem:[#allocation10] sm:$0xff]
    %v1108 = vld [vmem:[#allocation10 + $0x8] sm:$0xff]
    %v1109 = vld [vmem:[#allocation10 + $0x10] sm:$0xff]
    %v1110 = vld [vmem:[#allocation10 + $0x18] sm:$0xff]
    %v1111 = vld [vmem:[%s5] sm:$0x1]
    %v1113 = vlaneseq
    %v1114 = vshrl.u32 %v1113, 7
    %v1115 = vsub.s32 0, %v1114
    %v1116 = vrot.slane %v1111, %v1115
    %vm1118 = vcmask 261120
    %v1120 = vsel %vm1118, %v1105, 0
    %v1123 = vsel %vm1118, %v1106, 0
    %1125 = vmatprep.subr.mxu0 0.0
    %1126 = vmatpush1.msra.mxu0 %v1107
    %1127 = vmatprep.subr.mxu0 0.0
    %1128 = vmatpush1.msra.mxu0 %v1108
    %1129 = vmatprep.subr.mxu0 0.0
    %1130 = vmatpush1.msra.mxu0 %v1109
    %1131 = vmatprep.subr.mxu0 0.0
    %1132 = vmatpush1.msra.mxu0 %v1110
    %1133 = vmatprep.subr.mxu0 0.0
    %1134 = vmatpush1.msra.mxu0 0.0
    %1135 = vmatprep.subr.mxu0 0.0
    %1136 = vmatpush1.msra.mxu0 0.0
    %1137 = vmatprep.subr.mxu0 0.0
    %1138 = vmatpush1.msra.mxu0 0.0
    %1139 = vmatprep.subr.mxu0 0.0
    %1140 = vmatpush1.msra.mxu0 0.0
    %1141 = vmatprep.subr.mxu0 0.0
    %1142 = vmatpush1.msra.mxu0 0.0
    %1143 = vmatprep.subr.mxu0 0.0
    %1144 = vmatpush1.msra.mxu0 0.0
    %1145 = vmatprep.subr.mxu0 0.0
    %1146 = vmatpush1.msra.mxu0 0.0
    %1147 = vmatprep.subr.mxu0 0.0
    %1148 = vmatpush1.msra.mxu0 0.0
    %1149 = vmatprep.subr.mxu0 0.0
    %1150 = vmatpush1.msra.mxu0 0.0
    %1151 = vmatprep.subr.mxu0 0.0
    %1152 = vmatpush1.msra.mxu0 0.0
    %1153 = vmatprep.subr.mxu0 0.0
    %1154 = vmatpush1.msra.mxu0 0.0
    %1155 = vmatprep.subr.mxu0 0.0
    %1156 = vmatpush1.msra.mxu0 0.0
    %1157 = vmatprep.subr.mxu0 0.0
    %1158 = vmatpush1.msra.mxu0 0.0
    %1159 = vmatprep.subr.mxu0 0.0
    %1160 = vmatpush1.msra.mxu0 0.0
    %1161 = vmatprep.subr.mxu0 0.0
    %1162 = vmatpush1.msra.mxu0 0.0
    %1163 = vmatprep.subr.mxu0 0.0
    %1164 = vmatpush1.msra.mxu0 0.0
    %1165 = vmatprep.subr.mxu0 0.0
    %1166 = vmatpush1.msra.mxu0 0.0
    %1167 = vmatprep.subr.mxu0 0.0
    %1168 = vmatpush1.msra.mxu0 0.0
    %1169 = vmatprep.subr.mxu0 0.0
    %1170 = vmatpush1.msra.mxu0 0.0
    %1171 = vmatprep.subr.mxu0 0.0
    %1172 = vmatpush1.msra.mxu0 0.0
    %1173 = vmatprep.subr.mxu0 0.0
    %1174 = vmatpush1.msra.mxu0 0.0
    %1175 = vmatprep.subr.mxu0 0.0
    %1176 = vmatpush1.msra.mxu0 0.0
    %1177 = vmatprep.subr.mxu0 0.0
    %1178 = vmatpush1.msra.mxu0 0.0
    %1179 = vmatprep.subr.mxu0 0.0
    %1180 = vmatpush1.msra.mxu0 0.0
    %1181 = vmatprep.subr.mxu0 0.0
    %1182 = vmatpush1.msra.mxu0 0.0
    %1183 = vmatprep.subr.mxu0 0.0
    %1184 = vmatpush1.msra.mxu0 0.0
    %1185 = vmatprep.subr.mxu0 0.0
    %1186 = vmatpush1.msra.mxu0 0.0
    %1187 = vmatprep.subr.mxu0 0.0
    %1188 = vmatpush1.msra.mxu0 0.0
    %1189 = vmatprep.mubr.f32.mxu0 0.0
    %1190 = vmatmul.mubr.f32.gmra.mrb[0].mxu0 %v1120
    %v1191 = vpop.f32.mrb[0].mxu0
    %v1192 = vadd.f32 %v1116, %v1191
    %v1193 = vpop.f32.mrb[0].mxu0
    %1194 = vmatprep.mubr.f32.mxu0 0.0
    %1195 = vmatmul.mubr.f32.gmra.mrb[0].mxu0 %v1123
    %v1196 = vpop.f32.mrb[0].mxu0
    %v1197 = vadd.f32 %v1116, %v1196
    %v1198 = vpop.f32.mrb[0].mxu0
    %1199 = vdwg.mxu0
    %v1200 = vtanh.pop %v1192
    %v1201 = vtanh.pop %v1197
    %1202 = vst.msk [vmem:[#allocation11] sm:$0xff] %vm1118, %v1200
    %1203 = vst.msk [vmem:[#allocation11 + $0x8] sm:$0xff] %vm1118, %v1201
    // Predicated region
    $region46: #{tpu_custom_call.1} parent=1 // pred_check
      _
    $region47: #{tpu_custom_call.1} parent=1 // pred_check_branch
      %1205 = sbr.rel (0) target = $region49
    $region48: #{tpu_custom_call.1} parent=1 // pred_region
      %s1207 = ssub.s32 256, 256
      %1208 = vsyncadd [#allocation4], %s1207
      %s1209 = sshll.u32 [#allocation11], 4
      %s1210 = int_to_ptr.vmem [resolvable:$true] %s1209
      %1215 = dma.vmem_to_hbm [thread:$0]  %s1210, 256, %s6, [#allocation4], 128, 128, 8
    $region49: #{tpu_custom_call.1} parent=1 // pred_fallthru
      _
    // Predicated region
    $region50: #{tpu_custom_call.1} parent=1 // pred_check
      _
    $region51: #{tpu_custom_call.1} parent=1 // pred_check_branch
      %1217 = sbr.rel (0) target = $region53
    $region52: #{tpu_custom_call.1} parent=1 // pred_region
      %1218 = dma.done [#allocation4], 256
    $region53: #{tpu_custom_call.1} parent=1 // pred_fallthru
      _
    %1219 = vsyncpa [#allocation3], 1
    %1220 = vsyncpa [#allocation6], 1
    %1221 = vsyncpa [#allocation9], 1
    %1222 = vsyncpa [#allocation4], 1

</llo_original>
